<compile_context>
chip_gen: v7x
topology: tpu7x:2x2x1
jax: 0.10.0
libtpu: 0.0.40
codegen_flags: <defaults>
</compile_context>

<pallas_src>
import functools

import jax
import jax.numpy as jnp
import numpy as np
from jax import lax
from jax.experimental import pallas as pl
from jax.experimental.pallas import tpu as pltpu


# --------------------------------- kernel ----------------------------------
def _nce_kernel(xr_ref, xp_ref, xa_ref, idc_ref, idr_ref, out_ref, *,
                temperature, batch, block_rows, exp_in_bf16):
    i = pl.program_id(0)
    N = 2 * batch
    TR = block_rows
    inv_t = jnp.float32(1.0 / temperature)
    neg_inf = jnp.float32(-jnp.inf)

    x_rows = xr_ref[...]            # (TR, Dp)  row block, native (MXU) dtype
    x_all = xa_ref[...]             # (N, Dp)   resident stacked samples

    # One Gram matmul per block: contract the hidden dim, no transposes.
    dn = (((1,), (1,)), ((), ()))
    g = lax.dot_general(x_rows, x_all, dn,
                        preferred_element_type=jnp.float32) * inv_t   # (TR, N)

    # Positive ("correct class") logit of row r is <x_r, x_{(r+B) mod 2B}>.
    # Computed from the partner row block: (TR, Dp) work, not (TR, N).
    pos = jnp.sum(xr_ref[...].astype(jnp.float32) *
                  xp_ref[...].astype(jnp.float32),
                  axis=-1, keepdims=True) * inv_t                     # (TR, 1)

    # Mask logits where intents collide, except the positive column.
    r = lax.broadcasted_iota(jnp.int32, (TR, 1), 0) + i * TR          # (TR, 1)
    pos_col = jnp.where(r < batch, r + batch, r - batch)              # (TR, 1)
    c = lax.broadcasted_iota(jnp.int32, (TR, N), 1)                   # (TR, N)
    is_pos = c == pos_col                                             # (TR, N)
    same = idc_ref[...] == idr_ref[...]          # (TR,1)==(1,N) -> (TR, N)
    masked = jnp.where(same & jnp.logical_not(is_pos), neg_inf, g)

    # Stable row-wise log-sum-exp (positive column is never masked -> finite).
    m = jnp.max(masked, axis=-1, keepdims=True)
    shifted = masked - m
    if exp_in_bf16:   # v6e/v7x only: ~2x EUP throughput, ~1e-3 rel LSE error
        e = jnp.exp(shifted.astype(jnp.bfloat16)).astype(jnp.float32)
    else:
        e = jnp.exp(shifted)
    lse = m + jnp.log(jnp.sum(e, axis=-1, keepdims=True))

    # Per-block partial sum of per-row cross entropy; wrapper sums and /2B.
    out_ref[...] = jnp.sum(lse - pos, axis=0, keepdims=True).reshape(1, 1, 1)


# ------------------------------- host helpers -------------------------------
def _round_up(v, m):
    return ((v + m - 1) // m) * m


def _sublane_granularity(itemsize):
    if itemsize >= 4:
        return 8
    if itemsize == 2:
        return 16
    return 32


def _pick_block_rows(B, N, Dp, itemsize, sub, row_cap, temp_budget_bytes):
    """Largest TR <= min(B, row_cap) with B % TR == 0, TR % sub == 0 that keeps
    the per-step f32 epilogue slabs within the temp budget."""
    cands = [t for t in range(min(B, row_cap), 0, -1)
             if B % t == 0 and t % sub == 0]
    if not cands:
        return None
    for t in cands:
        if 6 * t * N * 4 + 4 * t * Dp * itemsize <= temp_budget_bytes:
            return t
    return cands[-1]


def _vmem_limit_bytes(N, Dp, TR, itemsize):
    resident = 2 * N * Dp * itemsize + 4 * N * 4        # resident X + ids views
    per_step = 4 * TR * Dp * itemsize + 4 * TR * 4      # row/partner/ids blocks
    temps = 8 * TR * N * 4                              # f32 epilogue slabs
    need = resident + per_step + temps + (2 << 20)
    try:
        cap = pltpu.get_tpu_info().vmem_capacity_bytes - (8 << 20)
    except Exception:  # hardware query unavailable -> conservative cap
        cap = 64 << 20
    return int(min(max(need, 32 << 20), cap))


# --------------------------------- wrapper ----------------------------------
def nce_loss(batch_sample_one, batch_sample_two, intent_ids=None, *,
             temperature=1.0, block_rows=None, compute_dtype=None,
             row_cap=256, exp_in_bf16=False):
    """Pallas implementation of NCELoss.forward (mean CE over 2B rows)."""
    B, D = batch_sample_one.shape
    N = 2 * B

    # MXU feed dtype (bf16 recommended at large D); fall back to f32 when the
    # batch cannot be tiled at the packed-sublane granularity.
    cd = (jnp.dtype(compute_dtype) if compute_dtype is not None
          else jnp.dtype(batch_sample_one.dtype))
    sub = _sublane_granularity(cd.itemsize)
    if B % sub != 0:
        cd = jnp.dtype(jnp.float32)
        sub = 8
    if B % sub != 0:
        raise ValueError(f"batch size {B} must be a multiple of 8")

    Dp = _round_up(D, 128)                      # lane-dense hidden dim

    # Row block: multiple of the sublane granularity, divides B (so the
    # positive-partner block never straddles the two views), VMEM-capped.
    if block_rows is None:
        TR = _pick_block_rows(B, N, Dp, cd.itemsize, sub, row_cap,
                              temp_budget_bytes=20 << 20)
    else:
        TR = int(block_rows)
    assert TR is not None and B % TR == 0 and TR % sub == 0, (
        f"block_rows must divide the batch and be a multiple of {sub} "
        f"for compute dtype {cd}")

    # Stack both views once -> one Gram matmul covers sim11/sim22/sim12.
    x = jnp.concatenate([batch_sample_one, batch_sample_two], axis=0).astype(cd)
    if Dp != D:
        x = jnp.pad(x, ((0, 0), (0, Dp - D)))   # zero cols don't change X X^T

    if intent_ids is None:
        # Unique id per sample reproduces the `intent_ids is None` branch
        # (only the sim11/sim22 diagonals are masked, sim12 untouched).
        ids = jnp.arange(B, dtype=jnp.int32)
    else:
        ids = intent_ids.reshape(-1).astype(jnp.int32)
    ids2 = jnp.concatenate([ids, ids], axis=0)   # (N,)
    ids_col = ids2.reshape(N, 1)
    ids_row = ids2.reshape(1, N)                 # lane-dense, resident

    grid = N // TR                               # always >= 2
    nb = B // TR                                 # partner block offset

    kernel = functools.partial(_nce_kernel, temperature=float(temperature),
                               batch=B, block_rows=TR, exp_in_bf16=exp_in_bf16)

    cost = pl.CostEstimate(
        flops=2 * N * N * Dp + 6 * N * N,
        transcendentals=N * N + N,
        bytes_accessed=3 * N * Dp * cd.itemsize + 8 * N + 4 * grid)

    out = pl.pallas_call(
        kernel,
        out_shape=jax.ShapeDtypeStruct((grid, 1, 1), jnp.float32),
        grid_spec=pl.GridSpec(
            grid=(grid,),
            in_specs=[
                pl.BlockSpec((TR, Dp), lambda i: (i, 0)),              # row block
                pl.BlockSpec((TR, Dp),
                             lambda i: ((i + nb) % (2 * nb), 0)),      # partner rows
                pl.BlockSpec((N, Dp), lambda i: (0, 0)),               # all rows (resident)
                pl.BlockSpec((TR, 1), lambda i: (i, 0)),               # ids, column view
                pl.BlockSpec((1, N), lambda i: (0, 0)),                # ids, row view (resident)
            ],
            out_specs=pl.BlockSpec((1, 1, 1), lambda i: (i, 0, 0)),    # per-block partial
        ),
        compiler_params=pltpu.CompilerParams(
            dimension_semantics=("parallel",),                         # megacore-shardable
            vmem_limit_bytes=_vmem_limit_bytes(N, Dp, TR, cd.itemsize)),
        cost_estimate=cost,
    )(x, x, x, ids_col, ids_row)

    return jnp.sum(out) / jnp.float32(N)          # CrossEntropyLoss mean over 2B


# ---------------------- pure-JAX reference (for checking) -------------------
def _nce_ref(a, b, ids, temperature):
    B = a.shape[0]
    sim11 = a @ a.T / temperature
    sim22 = b @ b.T / temperature
    sim12 = a @ b.T / temperature
    if ids is None:
        mask = jnp.eye(B, dtype=bool)
        sim11 = jnp.where(mask, -jnp.inf, sim11)
        sim22 = jnp.where(mask, -jnp.inf, sim22)
    else:
        mask = ids[:, None] == ids[None, :]
        mask12 = mask & ~jnp.eye(B, dtype=bool)
        sim11 = jnp.where(mask, -jnp.inf, sim11)
        sim22 = jnp.where(mask, -jnp.inf, sim22)
        sim12 = jnp.where(mask12, -jnp.inf, sim12)
    raw1 = jnp.concatenate([sim12, sim11], axis=-1)
    raw2 = jnp.concatenate([sim22, sim12.T], axis=-1)
    logits = jnp.concatenate([raw1, raw2], axis=0)
    labels = jnp.arange(2 * B)
    logp = jax.nn.log_softmax(logits, axis=-1)
    return -jnp.mean(logp[labels, labels])


if __name__ == "__main__":
    temperature = 0.5

    # ---- small shapes matching the module (B=8, D=32) ----
    B, D = 8, 32
    key = jax.random.PRNGKey(0)
    k1, k2, k3 = jax.random.split(key, 3)
    batch_sample_one = jax.random.normal(k1, (B, D), dtype=jnp.float32)
    batch_sample_two = jax.random.normal(k2, (B, D), dtype=jnp.float32)
    intent_ids = jax.random.randint(k3, (B,), 0, 4, dtype=jnp.int32)

    # 1) intent_ids given; f32 MXU feed, grid of 2 parallel row blocks.
    loss = jax.block_until_ready(
        nce_loss(batch_sample_one, batch_sample_two, intent_ids,
                 temperature=temperature))
    ref = _nce_ref(batch_sample_one, batch_sample_two, intent_ids, temperature)
    np.testing.assert_allclose(np.asarray(loss), np.asarray(ref),
                               rtol=1e-4, atol=1e-4)

    # 2) intent_ids=None branch.
    loss_none = jax.block_until_ready(
        nce_loss(batch_sample_one, batch_sample_two, None,
                 temperature=temperature))
    ref_none = _nce_ref(batch_sample_one, batch_sample_two, None, temperature)
    np.testing.assert_allclose(np.asarray(loss_none), np.asarray(ref_none),
                               rtol=1e-4, atol=1e-4)

    # 3) bf16 MXU feed + multi-block row tiling (B=32 -> TR=16, grid=4).
    B2, D2 = 32, 64
    kk1, kk2, kk3 = jax.random.split(jax.random.PRNGKey(0), 3)
    a2 = jax.random.normal(kk1, (B2, D2), dtype=jnp.float32)
    b2 = jax.random.normal(kk2, (B2, D2), dtype=jnp.float32)
    ids2 = jax.random.randint(kk3, (B2,), 0, 8, dtype=jnp.int32)
    loss_bf16 = jax.block_until_ready(
        nce_loss(a2, b2, ids2, temperature=temperature,
                 compute_dtype=jnp.bfloat16, block_rows=16))
    ref2 = _nce_ref(a2, b2, ids2, temperature)
    np.testing.assert_allclose(np.asarray(loss_bf16), np.asarray(ref2),
                               rtol=5e-2, atol=5e-2)

    print("KERNEL_OK")
</pallas_src>

<mosaic_0001>
module attributes {stable_mosaic.version = 11 : i64} {
  func.func @_nce_kernel(%arg0: i32, %arg1: memref<8x128xf32, #tpu.memory_space<vmem>>, %arg2: memref<8x128xf32, #tpu.memory_space<vmem>>, %arg3: memref<16x128xf32, #tpu.memory_space<vmem>>, %arg4: memref<8x1xi32, #tpu.memory_space<vmem>>, %arg5: memref<1x16xi32, #tpu.memory_space<vmem>>, %arg6: memref<1x1x1xf32, #tpu.memory_space<vmem>>) attributes {dimension_semantics = [#tpu.dimension_semantics<parallel>], iteration_bounds = array<i64: 2>, scalar_prefetch = 0 : i64, scratch_operands = 0 : i64, tpu.core_type = #tpu.core_type<tc>, window_params = [{transform_indices = @transform_0, window_bounds = array<i64: 8, 128>}, {transform_indices = @transform_1, window_bounds = array<i64: 8, 128>}, {pipeline_mode = #tpu.pipeline_mode<synchronous>, transform_indices = @transform_2, window_bounds = array<i64: 16, 128>}, {transform_indices = @transform_3, window_bounds = array<i64: 8, 1>}, {pipeline_mode = #tpu.pipeline_mode<synchronous>, transform_indices = @transform_4, window_bounds = array<i64: 1, 16>}, {transform_indices = @transform_5, window_bounds = array<i64: 1, 1, 1>}]} {
    %c0 = arith.constant 0 : index
    %c0_0 = arith.constant 0 : index
    %0 = vector.load %arg1[%c0, %c0_0] : memref<8x128xf32, #tpu.memory_space<vmem>>, vector<8x128xf32>
    %c0_1 = arith.constant 0 : index
    %c0_2 = arith.constant 0 : index
    %1 = vector.load %arg3[%c0_1, %c0_2] : memref<16x128xf32, #tpu.memory_space<vmem>>, vector<16x128xf32>
    %cst = arith.constant dense<0.000000e+00> : vector<8x16xf32>
    %2 = tpu.matmul %0, %1, %cst {dimension_numbers = #tpu.dot_dimension_numbers<[1], [1], [0], [0], [0, 0, 1, 0], [], []>} : vector<8x128xf32>, vector<16x128xf32>, vector<8x16xf32> -> vector<8x16xf32>
    %cst_3 = arith.constant 2.000000e+00 : f32
    %3 = vector.broadcast %cst_3 : f32 to vector<8x16xf32>
    %4 = arith.mulf %2, %3 : vector<8x16xf32>
    %c0_4 = arith.constant 0 : index
    %c0_5 = arith.constant 0 : index
    %5 = vector.load %arg1[%c0_4, %c0_5] : memref<8x128xf32, #tpu.memory_space<vmem>>, vector<8x128xf32>
    %c0_6 = arith.constant 0 : index
    %c0_7 = arith.constant 0 : index
    %6 = vector.load %arg2[%c0_6, %c0_7] : memref<8x128xf32, #tpu.memory_space<vmem>>, vector<8x128xf32>
    %7 = arith.mulf %5, %6 : vector<8x128xf32>
    %cst_8 = arith.constant dense<0.000000e+00> : vector<8xf32>
    %8 = vector.multi_reduction <add>, %7, %cst_8 [1] : vector<8x128xf32> to vector<8xf32>
    %9 = vector.shape_cast %8 : vector<8xf32> to vector<8x1xf32>
    %cst_9 = arith.constant 2.000000e+00 : f32
    %10 = vector.broadcast %cst_9 : f32 to vector<8x1xf32>
    %11 = arith.mulf %9, %10 : vector<8x1xf32>
    %12 = tpu.iota {dimensions = array<i32: 0>} : vector<8x1xi32>
    %c8_i32 = arith.constant 8 : i32
    %13 = arith.muli %arg0, %c8_i32 : i32
    %14 = vector.broadcast %13 : i32 to vector<8x1xi32>
    %15 = arith.addi %12, %14 : vector<8x1xi32>
    %c8_i32_10 = arith.constant 8 : i32
    %16 = vector.broadcast %c8_i32_10 : i32 to vector<8x1xi32>
    %17 = arith.cmpi slt, %15, %16 : vector<8x1xi32>
    %c8_i32_11 = arith.constant 8 : i32
    %18 = vector.broadcast %c8_i32_11 : i32 to vector<8x1xi32>
    %19 = arith.addi %15, %18 : vector<8x1xi32>
    %c8_i32_12 = arith.constant 8 : i32
    %20 = vector.broadcast %c8_i32_12 : i32 to vector<8x1xi32>
    %21 = arith.subi %15, %20 : vector<8x1xi32>
    %22 = arith.select %17, %19, %21 : vector<8x1xi1>, vector<8x1xi32>
    %23 = tpu.iota {dimensions = array<i32: 1>} : vector<8x16xi32>
    %24 = vector.broadcast %22 : vector<8x1xi32> to vector<8x16xi32>
    %25 = arith.cmpi eq, %23, %24 : vector<8x16xi32>
    %c0_13 = arith.constant 0 : index
    %c0_14 = arith.constant 0 : index
    %26 = vector.load %arg4[%c0_13, %c0_14] : memref<8x1xi32, #tpu.memory_space<vmem>>, vector<8x1xi32>
    %c0_15 = arith.constant 0 : index
    %c0_16 = arith.constant 0 : index
    %27 = vector.load %arg5[%c0_15, %c0_16] : memref<1x16xi32, #tpu.memory_space<vmem>>, vector<1x16xi32>
    %28 = vector.broadcast %26 : vector<8x1xi32> to vector<8x16xi32>
    %29 = vector.broadcast %27 : vector<1x16xi32> to vector<8x16xi32>
    %30 = arith.cmpi eq, %28, %29 : vector<8x16xi32>
    %cst_17 = arith.constant dense<true> : vector<8x16xi1>
    %31 = arith.xori %25, %cst_17 : vector<8x16xi1>
    %32 = arith.andi %30, %31 : vector<8x16xi1>
    %cst_18 = arith.constant 0xFF800000 : f32
    %33 = vector.broadcast %cst_18 : f32 to vector<8x16xf32>
    %34 = arith.select %32, %33, %4 : vector<8x16xi1>, vector<8x16xf32>
    %cst_19 = arith.constant dense<0xFF800000> : vector<8xf32>
    %35 = vector.multi_reduction <maximumf>, %34, %cst_19 [1] : vector<8x16xf32> to vector<8xf32>
    %36 = vector.shape_cast %35 : vector<8xf32> to vector<8x1xf32>
    %37 = vector.broadcast %36 : vector<8x1xf32> to vector<8x16xf32>
    %38 = arith.subf %34, %37 : vector<8x16xf32>
    %39 = math.exp %38 : vector<8x16xf32>
    %cst_20 = arith.constant dense<0.000000e+00> : vector<8xf32>
    %40 = vector.multi_reduction <add>, %39, %cst_20 [1] : vector<8x16xf32> to vector<8xf32>
    %41 = vector.shape_cast %40 : vector<8xf32> to vector<8x1xf32>
    %42 = math.log %41 : vector<8x1xf32>
    %43 = arith.addf %36, %42 : vector<8x1xf32>
    %44 = arith.subf %43, %11 : vector<8x1xf32>
    %cst_21 = arith.constant dense<0.000000e+00> : vector<1xf32>
    %45 = vector.multi_reduction <add>, %44, %cst_21 [0] : vector<8x1xf32> to vector<1xf32>
    %46 = vector.shape_cast %45 : vector<1xf32> to vector<1x1xf32>
    %47 = vector.shape_cast %46 : vector<1x1xf32> to vector<1x1x1xf32>
    %c0_22 = arith.constant 0 : index
    %c0_23 = arith.constant 0 : index
    %c0_24 = arith.constant 0 : index
    %48 = vector.load %arg6[%c0_22, %c0_23, %c0_24] : memref<1x1x1xf32, #tpu.memory_space<vmem>>, vector<1x1x1xf32>
    tpu.vector_store %arg6[%c0_22, %c0_23, %c0_24], %47 {strides = array<i32>} : memref<1x1x1xf32, #tpu.memory_space<vmem>>, vector<1x1x1xf32>,
    return
  }
  func.func @transform_0(%arg0: i32) -> (i32, i32) {
    %c0_i32 = arith.constant 0 : i32
    %c0_i32_0 = arith.constant 0 : i32
    return %arg0, %c0_i32 : i32, i32
  }
  func.func @transform_1(%arg0: i32) -> (i32, i32) {
    %c1_i32 = arith.constant 1 : i32
    %0 = arith.addi %arg0, %c1_i32 : i32
    %c2_i32 = arith.constant 2 : i32
    %c0_i32 = arith.constant 0 : i32
    %1 = arith.cmpi eq, %c2_i32, %c0_i32 : i32
    %c1_i32_0 = arith.constant 1 : i32
    %2 = arith.select %1, %c1_i32_0, %c2_i32 : i32
    %3 = arith.remsi %0, %2 : i32
    %c0_i32_1 = arith.constant 0 : i32
    %4 = arith.cmpi ne, %3, %c0_i32_1 : i32
    %c0_i32_2 = arith.constant 0 : i32
    %5 = arith.cmpi slt, %3, %c0_i32_2 : i32
    %c0_i32_3 = arith.constant 0 : i32
    %6 = arith.cmpi slt, %2, %c0_i32_3 : i32
    %7 = arith.xori %5, %6 : i1
    %8 = arith.andi %7, %4 : i1
    %9 = arith.addi %3, %2 : i32
    %10 = arith.select %8, %9, %3 : i32
    %c0_i32_4 = arith.constant 0 : i32
    %c0_i32_5 = arith.constant 0 : i32
    return %10, %c0_i32_4 : i32, i32
  }
  func.func @transform_2(%arg0: i32) -> (i32, i32) {
    %c0_i32 = arith.constant 0 : i32
    %c0_i32_0 = arith.constant 0 : i32
    %c0_i32_1 = arith.constant 0 : i32
    return %c0_i32, %c0_i32_0 : i32, i32
  }
  func.func @transform_3(%arg0: i32) -> (i32, i32) {
    %c0_i32 = arith.constant 0 : i32
    %c0_i32_0 = arith.constant 0 : i32
    return %arg0, %c0_i32 : i32, i32
  }
  func.func @transform_4(%arg0: i32) -> (i32, i32) {
    %c0_i32 = arith.constant 0 : i32
    %c0_i32_0 = arith.constant 0 : i32
    %c0_i32_1 = arith.constant 0 : i32
    return %c0_i32, %c0_i32_0 : i32, i32
  }
  func.func @transform_5(%arg0: i32) -> (i32, i32, i32) {
    %c0_i32 = arith.constant 0 : i32
    %c0_i32_0 = arith.constant 0 : i32
    %c0_i32_1 = arith.constant 0 : i32
    return %arg0, %c0_i32, %c0_i32_0 : i32, i32, i32
  }
}

</mosaic_0001>

<llo_original>
// kernel: tpu_custom_call.1
$region0: #{tpu_custom_call.1}
  #allocation0 [shape = 'u32[]', space=smem, size = 0x4, offset = 0x4, fixed_abs, tag = 'smem constant byte address 0x4 - core index']
  #allocation1 [shape = 'u32[144,128]{1,0:T(1,128)}', space=vmem, size = 0x12000, scoped, tag = 'internal scratch']
  %s0 = inlined_call_operand.vmem [shape: f32[16,128], index: 0, kind: input, shape index: {}]
  %s1 = inlined_call_operand.hbm [shape: f32[16,128], index: 1, kind: input, shape index: {}]
  %s2 = inlined_call_operand.hbm [shape: f32[16,128], index: 2, kind: input, shape index: {}]
  %s3 = inlined_call_operand.vmem [shape: s32[16,1], index: 3, kind: input, shape index: {}]
  %s4 = inlined_call_operand.vmem [shape: s32[1,16], index: 4, kind: input, shape index: {}]
  %s5 = inlined_call_operand.vmem [shape: f32[2,1,1], index: 5, kind: output, shape index: {}]
  %s6 = sld [smem:[#allocation0]]
  $region61: #{tpu_custom_call.1} parent=0
    _
  %s8 = ssub.s32 1, %s6
  %s9 = scalar_select 0, %s8, %s6
  $region1: #{tpu_custom_call.1} parent=0
    #allocation2 [shape = 'u8[8192]{0}', space=vmem, size = 0x2000, scoped, tag = 'input window, operand 1']
    #allocation3 [shape = 's32[2]{0}', space=sflag, size = 0x8, scoped, tag = 'scoped memory for tpu_custom_call.1']
    #allocation4 [shape = 'u8[8192]{0}', space=vmem, size = 0x2000, scoped, tag = 'input window, operand 2, single buffered']
    #allocation5 [shape = 's32[1]{0}', space=sflag, size = 0x4, scoped, tag = 'scoped memory for tpu_custom_call.1']
    %10 = vsyncpa [#allocation3], 0
    %s11 = scalar_lea.sflag [#allocation3], 1
    %12 = vsyncpa %s11, 0
    %13 = vsyncpa [#allocation5], 0
    loop: start=0, step=1, limit=4
    $region2: #{tpu_custom_call.1} parent=1 // loop_pre_header
      _
    $region3: #{tpu_custom_call.1} parent=1 // loop_header
      %s15 = sphi 0, %s19
      %p16 = scmp.ge.s32.totalorder %s15, 4
      %s25 = sphi 0, %s27
      %s28 = sphi 0, %s25
      %s29 = sphi 0, %s28
      %s45 = sphi 0, %s29
      %s77 = sphi 0, %s79
      %s80 = sphi 0, %s77
      %s81 = sphi 0, %s80
      %s97 = sphi 0, %s81
      %s101 = sphi 0, %s101
      %s103 = sphi 0, %s101
      %s104 = sphi 0, %s103
      %s118 = sphi 0, %s104
      %s124 = sphi 0, %s126
      %s127 = sphi 0, %s124
      %s128 = sphi 0, %s127
      %s144 = sphi 0, %s128
      %s148 = sphi 0, %s148
      %s150 = sphi 0, %s148
      %s151 = sphi 0, %s150
      %s165 = sphi 0, %s151
      %s171 = sphi 0, %s173
      %s174 = sphi 0, %s171
      %s175 = sphi 0, %s174
      %s191 = sphi 0, %s175
    $region4: #{tpu_custom_call.1} parent=1 // loop_header_branch
      %18 = sbr.rel (%p16) target = $region8
    $region5: #{tpu_custom_call.1} parent=1 // loop_body
      %s20 = ssub.s32 %s15, 1
      %s21 = ssub.s32 %s15, 2
      %s22 = sadd.s32 %s15, 1
      %s23 = ssub.s32 %s15, %s22
      %p24 = scmp.eq.s32.totalorder %s23, 0
      %s26 = sadd.s32 %s25, 1
      %s27 = scalar_select %p24, %s25, %s26
      %p30 = pneg %p24
      %p31 = scmp.eq.s32.totalorder %s15, 1
      %p32 = por %p30, %p31
      %p33 = scmp.ne.s32.totalorder %s25, %s28
      %p34 = scmp.eq.s32.totalorder %s15, 0
      %p35 = por %p33, %p34
      %p36 = scmp.ne.s32.totalorder %s25, %s28
      %p37 = scmp.eq.s32.totalorder %s20, 1
      %p38 = por %p36, %p37
      %p39 = scmp.ne.s32.totalorder %s28, %s29
      %p40 = scmp.eq.s32.totalorder %s20, 0
      %p41 = por %p39, %p40
      %p42 = scmp.ne.s32.totalorder %s28, %s29
      %p43 = scmp.eq.s32.totalorder %s21, 1
      %p44 = por %p42, %p43
      %p46 = scmp.ne.s32.totalorder %s29, %s45
      %p47 = scmp.eq.s32.totalorder %s21, 0
      %p48 = por %p46, %p47
      %s49 = sadd.s32 %s15, 1
      %p50 = scmp.lt.s32.totalorder %s49, 0
      %s51 = ssub.s32 0, %s49
      %s52 = scalar_select %p50, %s51, %s49
      %s53 = sand.u32 %s52, 1
      %s54 = ssub.s32 0, %s53
      %s55 = scalar_select %p50, %s54, %s53
      %p56 = scmp.ne.s32.totalorder %s55, 0
      %p57 = scmp.lt.s32.totalorder %s55, 0
      %p58 = pnand %p57, %p56
      %p59 = pneg %p58
      %s60 = sadd.s32 %s55, 2
      %s61 = scalar_select %p59, %s60, %s55
      %s62 = sadd.s32 %s22, 1
      %p63 = scmp.lt.s32.totalorder %s62, 0
      %s64 = ssub.s32 0, %s62
      %s65 = scalar_select %p63, %s64, %s62
      %s66 = sand.u32 %s65, 1
      %s67 = ssub.s32 0, %s66
      %s68 = scalar_select %p63, %s67, %s66
      %p69 = scmp.ne.s32.totalorder %s68, 0
      %p70 = scmp.lt.s32.totalorder %s68, 0
      %p71 = pnand %p70, %p69
      %p72 = pneg %p71
      %s73 = sadd.s32 %s68, 2
      %s74 = scalar_select %p72, %s73, %s68
      %s75 = ssub.s32 %s61, %s74
      %p76 = scmp.eq.s32.totalorder %s75, 0
      %s78 = sadd.s32 %s77, 1
      %s79 = scalar_select %p76, %s77, %s78
      %p82 = pneg %p76
      %p83 = scmp.eq.s32.totalorder %s15, 1
      %p84 = por %p82, %p83
      %p85 = scmp.ne.s32.totalorder %s77, %s80
      %p86 = scmp.eq.s32.totalorder %s15, 0
      %p87 = por %p85, %p86
      %p88 = scmp.ne.s32.totalorder %s77, %s80
      %p89 = scmp.eq.s32.totalorder %s20, 1
      %p90 = por %p88, %p89
      %p91 = scmp.ne.s32.totalorder %s80, %s81
      %p92 = scmp.eq.s32.totalorder %s20, 0
      %p93 = por %p91, %p92
      %p94 = scmp.ne.s32.totalorder %s80, %s81
      %p95 = scmp.eq.s32.totalorder %s21, 1
      %p96 = por %p94, %p95
      %p98 = scmp.ne.s32.totalorder %s81, %s97
      %p99 = scmp.eq.s32.totalorder %s21, 0
      %p100 = por %p98, %p99
      %s102 = sadd.s32 %s101, 1
      %p105 = scmp.eq.s32.totalorder %s15, 1
      %p106 = scmp.ne.s32.totalorder %s101, %s103
      %p107 = scmp.eq.s32.totalorder %s15, 0
      %p108 = por %p106, %p107
      %p109 = scmp.ne.s32.totalorder %s101, %s103
      %p110 = scmp.eq.s32.totalorder %s20, 1
      %p111 = por %p109, %p110
      %p112 = scmp.ne.s32.totalorder %s103, %s104
      %p113 = scmp.eq.s32.totalorder %s20, 0
      %p114 = por %p112, %p113
      %p115 = scmp.ne.s32.totalorder %s103, %s104
      %p116 = scmp.eq.s32.totalorder %s21, 1
      %p117 = por %p115, %p116
      %p119 = scmp.ne.s32.totalorder %s104, %s118
      %p120 = scmp.eq.s32.totalorder %s21, 0
      %p121 = por %p119, %p120
      %s122 = ssub.s32 %s15, %s22
      %p123 = scmp.eq.s32.totalorder %s122, 0
      %s125 = sadd.s32 %s124, 1
      %s126 = scalar_select %p123, %s124, %s125
      %p129 = pneg %p123
      %p130 = scmp.eq.s32.totalorder %s15, 1
      %p131 = por %p129, %p130
      %p132 = scmp.ne.s32.totalorder %s124, %s127
      %p133 = scmp.eq.s32.totalorder %s15, 0
      %p134 = por %p132, %p133
      %p135 = scmp.ne.s32.totalorder %s124, %s127
      %p136 = scmp.eq.s32.totalorder %s20, 1
      %p137 = por %p135, %p136
      %p138 = scmp.ne.s32.totalorder %s127, %s128
      %p139 = scmp.eq.s32.totalorder %s20, 0
      %p140 = por %p138, %p139
      %p141 = scmp.ne.s32.totalorder %s127, %s128
      %p142 = scmp.eq.s32.totalorder %s21, 1
      %p143 = por %p141, %p142
      %p145 = scmp.ne.s32.totalorder %s128, %s144
      %p146 = scmp.eq.s32.totalorder %s21, 0
      %p147 = por %p145, %p146
      %s149 = sadd.s32 %s148, 1
      %p152 = scmp.eq.s32.totalorder %s15, 1
      %p153 = scmp.ne.s32.totalorder %s148, %s150
      %p154 = scmp.eq.s32.totalorder %s15, 0
      %p155 = por %p153, %p154
      %p156 = scmp.ne.s32.totalorder %s148, %s150
      %p157 = scmp.eq.s32.totalorder %s20, 1
      %p158 = por %p156, %p157
      %p159 = scmp.ne.s32.totalorder %s150, %s151
      %p160 = scmp.eq.s32.totalorder %s20, 0
      %p161 = por %p159, %p160
      %p162 = scmp.ne.s32.totalorder %s150, %s151
      %p163 = scmp.eq.s32.totalorder %s21, 1
      %p164 = por %p162, %p163
      %p166 = scmp.ne.s32.totalorder %s151, %s165
      %p167 = scmp.eq.s32.totalorder %s21, 0
      %p168 = por %p166, %p167
      %s169 = ssub.s32 %s15, %s22
      %p170 = scmp.eq.s32.totalorder %s169, 0
      %s172 = sadd.s32 %s171, 1
      %s173 = scalar_select %p170, %s171, %s172
      %p176 = pneg %p170
      %p177 = scmp.eq.s32.totalorder %s15, 1
      %p178 = por %p176, %p177
      %p179 = scmp.ne.s32.totalorder %s171, %s174
      %p180 = scmp.eq.s32.totalorder %s15, 0
      %p181 = por %p179, %p180
      %p182 = scmp.ne.s32.totalorder %s171, %s174
      %p183 = scmp.eq.s32.totalorder %s20, 1
      %p184 = por %p182, %p183
      %p185 = scmp.ne.s32.totalorder %s174, %s175
      %p186 = scmp.eq.s32.totalorder %s20, 0
      %p187 = por %p185, %p186
      %p188 = scmp.ne.s32.totalorder %s174, %s175
      %p189 = scmp.eq.s32.totalorder %s21, 1
      %p190 = por %p188, %p189
      %p192 = scmp.ne.s32.totalorder %s175, %s191
      %p193 = scmp.eq.s32.totalorder %s21, 0
      %p194 = por %p192, %p193
      %p195 = scmp.le.s32.totalorder 1, %s15
      %p196 = scmp.lt.s32.totalorder %s15, 3
      %p197 = pnand %p195, %p196
      %p198 = pneg %p197
      // Predicated region
      $region9: #{tpu_custom_call.1} parent=5 // pred_check
        _
      $region10: #{tpu_custom_call.1} parent=5 // pred_check_branch
        %200 = sbr.rel (%p197) target = $region12
      $region11: #{tpu_custom_call.1} parent=5 // pred_region
        %s201 = ssub.s32 %s15, 1
        // Predicated region
        $region13: #{tpu_custom_call.1} parent=11 // pred_check
          %p202 = pneg %p114
        $region14: #{tpu_custom_call.1} parent=11 // pred_check_branch
          %204 = sbr.rel (%p202) target = $region16
        $region15: #{tpu_custom_call.1} parent=11 // pred_region
          %s206 = ssub.s32 256, 256
          %207 = vsyncadd [#allocation5], %s206
          %s208 = sshll.u32 [#allocation4], 4
          %s209 = int_to_ptr.vmem [resolvable:$true] %s208
          %214 = dma.hbm_to_vmem [thread:$0]  %s2, 256, %s209, [#allocation5], 128, 128, 8
        $region16: #{tpu_custom_call.1} parent=11 // pred_fallthru
          _
        // Predicated region
        $region17: #{tpu_custom_call.1} parent=11 // pred_check
          %p215 = pneg %p161
        $region18: #{tpu_custom_call.1} parent=11 // pred_check_branch
          %217 = sbr.rel (%p215) target = $region20
        $region19: #{tpu_custom_call.1} parent=11 // pred_region
          _
        $region20: #{tpu_custom_call.1} parent=11 // pred_fallthru
          _
      $region12: #{tpu_custom_call.1} parent=5 // pred_fallthru
        _
      %p218 = scmp.lt.s32.totalorder %s15, 2
      // Predicated region
      $region21: #{tpu_custom_call.1} parent=5 // pred_check
        %p219 = pneg %p218
      $region22: #{tpu_custom_call.1} parent=5 // pred_check_branch
        %221 = sbr.rel (%p219) target = $region24
      $region23: #{tpu_custom_call.1} parent=5 // pred_region
        // Predicated region
        $region25: #{tpu_custom_call.1} parent=23 // pred_check
          %p222 = pneg %p35
        $region26: #{tpu_custom_call.1} parent=23 // pred_check_branch
          %224 = sbr.rel (%p222) target = $region28
        $region27: #{tpu_custom_call.1} parent=23 // pred_region
          %p225 = scmp.lt.s32.totalorder %s15, 1
          %s226 = scalar_select %p225, %s15, 1
          %s227 = smul.addr %s226, 8
          %s228 = scalar_lea.vmem %s0, %s227
        $region28: #{tpu_custom_call.1} parent=23 // pred_fallthru
          _
        // Predicated region
        $region29: #{tpu_custom_call.1} parent=23 // pred_check
          %p229 = pneg %p87
        $region30: #{tpu_custom_call.1} parent=23 // pred_check_branch
          %231 = sbr.rel (%p229) target = $region32
        $region31: #{tpu_custom_call.1} parent=23 // pred_region
          %s232 = sand.u32 %s77, 1
          %s233 = scalar_lea.sflag [#allocation3], %s232
          %s234 = sand.u32 %s77, 1
          %s235 = smul.addr %s234, 8
          %s236 = scalar_lea.vmem [#allocation2], %s235
          %s237 = sadd.s32 %s15, 1
          %p238 = scmp.lt.s32.totalorder %s237, 0
          %s239 = ssub.s32 0, %s237
          %s240 = scalar_select %p238, %s239, %s237
          %s241 = sand.u32 %s240, 1
          %s242 = ssub.s32 0, %s241
          %s243 = scalar_select %p238, %s242, %s241
          %p244 = scmp.ne.s32.totalorder %s243, 0
          %p245 = scmp.lt.s32.totalorder %s243, 0
          %p246 = pnand %p245, %p244
          %p247 = pneg %p246
          %s248 = sadd.s32 %s243, 2
          %s249 = scalar_select %p247, %s248, %s243
          %s251 = ssub.s32 128, 128
          %252 = vsyncadd %s233, %s251
          %s253 = smul.addr %s249, 128
          %s254 = scalar_lea.hbm %s1, %s253
          %s256 = sshll.u32 %s236, 4
          %s257 = int_to_ptr.vmem [resolvable:$true] %s256
          %259 = dma.hbm_to_vmem [thread:$0]  %s254, 128, %s257, %s233
        $region32: #{tpu_custom_call.1} parent=23 // pred_fallthru
          _
        // Predicated region
        $region33: #{tpu_custom_call.1} parent=23 // pred_check
          %p260 = pneg %p134
        $region34: #{tpu_custom_call.1} parent=23 // pred_check_branch
          %262 = sbr.rel (%p260) target = $region36
        $region35: #{tpu_custom_call.1} parent=23 // pred_region
          %p263 = scmp.lt.s32.totalorder %s15, 1
          %s264 = scalar_select %p263, %s15, 1
          %s265 = smul.addr %s264, 8
          %s266 = scalar_lea.vmem %s3, %s265
        $region36: #{tpu_custom_call.1} parent=23 // pred_fallthru
          _
      $region24: #{tpu_custom_call.1} parent=5 // pred_fallthru
        _
      %p267 = scmp.le.s32.totalorder 1, %s15
      %p268 = scmp.lt.s32.totalorder %s15, 3
      %p269 = pnand %p267, %p268
      %p270 = pneg %p269
      // Predicated region
      $region37: #{tpu_custom_call.1} parent=5 // pred_check
        _
      $region38: #{tpu_custom_call.1} parent=5 // pred_check_branch
        %272 = sbr.rel (%p269) target = $region40
      $region39: #{tpu_custom_call.1} parent=5 // pred_region
        %s273 = ssub.s32 %s15, 1
        %s274 = sand.u32 %s80, 1
        %s275 = scalar_lea.sflag [#allocation3], %s274
        %s276 = sand.u32 %s80, 1
        %s277 = smul.addr %s276, 8
        %s278 = scalar_lea.vmem [#allocation2], %s277
        // Predicated region
        $region41: #{tpu_custom_call.1} parent=39 // pred_check
          %p279 = pneg %p93
        $region42: #{tpu_custom_call.1} parent=39 // pred_check_branch
          %281 = sbr.rel (%p279) target = $region44
        $region43: #{tpu_custom_call.1} parent=39 // pred_region
          %282 = dma.done %s275, 128
        $region44: #{tpu_custom_call.1} parent=39 // pred_fallthru
          _
        // Predicated region
        $region45: #{tpu_custom_call.1} parent=39 // pred_check
          %p283 = pneg %p114
        $region46: #{tpu_custom_call.1} parent=39 // pred_check_branch
          %285 = sbr.rel (%p283) target = $region48
        $region47: #{tpu_custom_call.1} parent=39 // pred_region
          %286 = dma.done [#allocation5], 256
        $region48: #{tpu_custom_call.1} parent=39 // pred_fallthru
          _
        %p287 = scmp.lt.s32.totalorder %s20, 1
        %s288 = scalar_select %p287, %s20, 1
        %s289 = smul.addr %s288, 8
        %s290 = scalar_lea.vmem %s0, %s289
        %p291 = pneg %p41
        %p292 = pneg %p38
        %s293 = sand.u32 %s80, 1
        %s294 = scalar_lea.sflag [#allocation3], %s293
        %s295 = sand.u32 %s80, 1
        %s296 = smul.addr %s295, 8
        %s297 = scalar_lea.vmem [#allocation2], %s296
        %p298 = pneg %p93
        %p299 = pneg %p90
        %p300 = pneg %p114
        %p301 = pneg %p111
        %p302 = scmp.lt.s32.totalorder %s20, 1
        %s303 = scalar_select %p302, %s20, 1
        %s304 = smul.addr %s303, 8
        %s305 = scalar_lea.vmem %s3, %s304
        %p306 = pneg %p140
        %p307 = pneg %p137
        %p308 = pneg %p161
        %p309 = pneg %p158
        %p310 = pneg %p187
        %p311 = pneg %p184
        %p312 = scmp.lt.s32.totalorder %s20, 1
        %s313 = scalar_select %p312, %s20, 1
        %s314 = scalar_lea.vmem %s5, %s313
        %p315 = scmp.lt.s32.totalorder %s20, 1
        %s316 = scalar_select %p315, %s20, 1
        %s317 = smul.addr %s316, 8
        %s318 = scalar_lea.vmem %s0, %s317
        %s319 = sadd.s32 %s20, 1
        %p320 = scmp.lt.s32.totalorder %s319, 0
        %s321 = ssub.s32 0, %s319
        %s322 = scalar_select %p320, %s321, %s319
        %s323 = sand.u32 %s322, 1
        %s324 = ssub.s32 0, %s323
        %s325 = scalar_select %p320, %s324, %s323
        %p326 = scmp.ne.s32.totalorder %s325, 0
        %p327 = scmp.lt.s32.totalorder %s325, 0
        %p328 = pnand %p327, %p326
        %p329 = pneg %p328
        %s330 = sadd.s32 %s325, 2
        %s331 = scalar_select %p329, %s330, %s325
        %p332 = scmp.lt.s32.totalorder %s20, 1
        %s333 = scalar_select %p332, %s20, 1
        %s334 = smul.addr %s333, 8
        %s335 = scalar_lea.vmem %s3, %s334
        %p336 = scmp.lt.s32.totalorder %s20, 1
        %s337 = scalar_select %p336, %s20, 1
        %s338 = scalar_lea.vmem %s5, %s337
        %v339 = vld [vmem:[%s318] sm:$0xff]
        %v340 = vld [vmem:[#allocation4] sm:$0xff]
        %v341 = vld [vmem:[#allocation4 + $0x8] sm:$0xff]
        %342 = vmatprep.subr.mxu0 0.0
        %343 = vmatpush1.xpose.msra.mxu0 %v340
        %344 = vmatprep.subr.mxu0 0.0
        %345 = vmatpush1.xpose.msra.mxu0 %v341
        %346 = vmatprep.subr.mxu0 0.0
        %347 = vmatpush1.xpose.msra.mxu0 0.0
        %348 = vmatprep.subr.mxu0 0.0
        %349 = vmatpush1.xpose.msra.mxu0 0.0
        %350 = vmatprep.subr.mxu0 0.0
        %351 = vmatpush1.xpose.msra.mxu0 0.0
        %352 = vmatprep.subr.mxu0 0.0
        %353 = vmatpush1.xpose.msra.mxu0 0.0
        %354 = vmatprep.subr.mxu0 0.0
        %355 = vmatpush1.xpose.msra.mxu0 0.0
        %356 = vmatprep.subr.mxu0 0.0
        %357 = vmatpush1.xpose.msra.mxu0 0.0
        %358 = vmatprep.subr.mxu0 0.0
        %359 = vmatpush1.xpose.msra.mxu0 0.0
        %360 = vmatprep.subr.mxu0 0.0
        %361 = vmatpush1.xpose.msra.mxu0 0.0
        %362 = vmatprep.subr.mxu0 0.0
        %363 = vmatpush1.xpose.msra.mxu0 0.0
        %364 = vmatprep.subr.mxu0 0.0
        %365 = vmatpush1.xpose.msra.mxu0 0.0
        %366 = vmatprep.subr.mxu0 0.0
        %367 = vmatpush1.xpose.msra.mxu0 0.0
        %368 = vmatprep.subr.mxu0 0.0
        %369 = vmatpush1.xpose.msra.mxu0 0.0
        %370 = vmatprep.subr.mxu0 0.0
        %371 = vmatpush1.xpose.msra.mxu0 0.0
        %372 = vmatprep.subr.mxu0 0.0
        %373 = vmatpush1.xpose.msra.mxu0 0.0
        %374 = vmatprep.subr.mxu0 0.0
        %375 = vmatpush1.xpose.msra.mxu0 0.0
        %376 = vmatprep.subr.mxu0 0.0
        %377 = vmatpush1.xpose.msra.mxu0 0.0
        %378 = vmatprep.subr.mxu0 0.0
        %379 = vmatpush1.xpose.msra.mxu0 0.0
        %380 = vmatprep.subr.mxu0 0.0
        %381 = vmatpush1.xpose.msra.mxu0 0.0
        %382 = vmatprep.subr.mxu0 0.0
        %383 = vmatpush1.xpose.msra.mxu0 0.0
        %384 = vmatprep.subr.mxu0 0.0
        %385 = vmatpush1.xpose.msra.mxu0 0.0
        %386 = vmatprep.subr.mxu0 0.0
        %387 = vmatpush1.xpose.msra.mxu0 0.0
        %388 = vmatprep.subr.mxu0 0.0
        %389 = vmatpush1.xpose.msra.mxu0 0.0
        %390 = vmatprep.subr.mxu0 0.0
        %391 = vmatpush1.xpose.msra.mxu0 0.0
        %392 = vmatprep.subr.mxu0 0.0
        %393 = vmatpush1.xpose.msra.mxu0 0.0
        %394 = vmatprep.subr.mxu0 0.0
        %395 = vmatpush1.xpose.msra.mxu0 0.0
        %396 = vmatprep.subr.mxu0 0.0
        %397 = vmatpush1.xpose.msra.mxu0 0.0
        %398 = vmatprep.subr.mxu0 0.0
        %399 = vmatpush1.xpose.msra.mxu0 0.0
        %400 = vmatprep.subr.mxu0 0.0
        %401 = vmatpush1.xpose.msra.mxu0 0.0
        %402 = vmatprep.subr.mxu0 0.0
        %403 = vmatpush1.xpose.msra.mxu0 0.0
        %404 = vmatprep.subr.mxu0 0.0
        %405 = vmatpush1.xpose.msra.mxu0 0.0
        %406 = vmatprep.mubr.f32.mxu0 0.0
        %407 = vmatmul.mubr.f32.gmra.mrb[0].mxu0 %v339
        %v408 = vpop.f32.mrb[0].mxu0
        %v409 = vadd.f32 0.0, %v408
        %v410 = vpop.f32.mrb[0].mxu0
        %411 = vdwg.mxu0
        %v412 = vmul.f32 %v409, 2.0
        %v413 = vld [vmem:[%s278] sm:$0xff]
        %v414 = vmul.f32 %v339, %v413
        %415 = vadd.xlane.f32.xlu0 %v414
        %v416 = vpop.xlane.xlu0 %415
        %v417 = vmul.f32 %v416, 2.0
        %v418 = vlaneseq
        %v419 = vshrl.u32 %v418, 7
        %s420 = smul.u32 %s20, 8
        %v421 = vstv %s420
        %v422 = vadd.s32 %v419, %v421
        %vm423 = vcmp.lt.s32.totalorder %v422, 8
        %v424 = vadd.s32 %v422, 8
        %v425 = vsub.s32 %v422, 8
        %v426 = vsel %vm423, %v424, %v425
        %v427 = vlaneseq
        %v428 = vand.u32 %v427, 127
        %vm429 = vcmp.eq.s32.totalorder %v428, %v426
        %v430 = vld [vmem:[%s335] sm:$0xff]
        %v431 = vld [vmem:[%s4] sm:$0x1]
        %432 = vset.pattern.permute.xlu0 0
        %433 = vperm.xlu0 %432, %v430
        %v434 = vpop.permute.xlu0 %433
        %v435 = vlaneseq
        %v436 = vshrl.u32 %v435, 7
        %v437 = vsub.s32 0, %v436
        %v438 = vrot.slane %v431, %v437
        %vm439 = vcmp.eq.s32.totalorder %v434, %v438
        %vm440 = vmxor %vm429, 1
        %vm441 = vmand %vm439, %vm440
        %v442 = vsel %vm441, -inf, %v412
        %vm443 = vcmask 130048
        %v444 = vsel %vm443, %v442, -inf
        %445 = vmax.xlane.f32.xlu0 %v444
        %v446 = vpop.xlane.xlu0 %445
        %v447 = vsub.f32 %v442, %v446
        %v448 = vmul.f32 %v447, 1.442695
        %v449 = vpow.pop %v448
        %v450 = vsel %vm443, %v449, 0.0
        %451 = vadd.xlane.f32.xlu0 %v450
        %v452 = vpop.xlane.xlu0 %451
        %v453 = vlog2.pop %v452
        %v454 = vmul.f32 %v453, 0.6931472
        %v455 = vadd.f32 %v446, %v454
        %v456 = vsub.f32 %v455, %v417
        %v457 = vrot.slane %v456, 4
        %v458 = vadd.f32 %v456, %v457
        %v459 = vrot.slane %v458, 2
        %v460 = vadd.f32 %v458, %v459
        %v461 = vrot.slane %v460, 1
        %v462 = vadd.f32 %v460, %v461
        %vm463 = vcmask 0
        %464 = vst.msk [vmem:[%s338] sm:$0x1] %vm463, %v462
        %p465 = scmp.lt.s32.totalorder %s20, 1
        %s466 = scalar_select %p465, %s20, 1
        %s467 = scalar_lea.vmem %s5, %s466
        // Predicated region
        $region49: #{tpu_custom_call.1} parent=39 // pred_check
          %p468 = pneg %p184
        $region50: #{tpu_custom_call.1} parent=39 // pred_check_branch
          %470 = sbr.rel (%p468) target = $region52
        $region51: #{tpu_custom_call.1} parent=39 // pred_region
          _
        $region52: #{tpu_custom_call.1} parent=39 // pred_fallthru
          _
      $region40: #{tpu_custom_call.1} parent=5 // pred_fallthru
        _
      %p471 = scmp.le.s32.totalorder 2, %s15
      // Predicated region
      $region53: #{tpu_custom_call.1} parent=5 // pred_check
        %p472 = pneg %p471
      $region54: #{tpu_custom_call.1} parent=5 // pred_check_branch
        %474 = sbr.rel (%p472) target = $region56
      $region55: #{tpu_custom_call.1} parent=5 // pred_region
        %s475 = ssub.s32 %s15, 2
        // Predicated region
        $region57: #{tpu_custom_call.1} parent=55 // pred_check
          %p476 = pneg %p190
        $region58: #{tpu_custom_call.1} parent=55 // pred_check_branch
          %478 = sbr.rel (%p476) target = $region60
        $region59: #{tpu_custom_call.1} parent=55 // pred_region
          %p479 = scmp.lt.s32.totalorder %s21, 1
          %s480 = scalar_select %p479, %s21, 1
          %s481 = scalar_lea.vmem %s5, %s480
        $region60: #{tpu_custom_call.1} parent=55 // pred_fallthru
          _
      $region56: #{tpu_custom_call.1} parent=5 // pred_fallthru
        _
    $region6: #{tpu_custom_call.1} parent=1 // loop_footer
      %s19 = sadd.s32 1, %s15
    $region7: #{tpu_custom_call.1} parent=1 // loop_footer_branch
      %14 = sbr.rel target = $region3
    $region8: #{tpu_custom_call.1} parent=1 // loop_exit
      _
    %482 = vsyncpa [#allocation3], 1
    %s483 = scalar_lea.sflag [#allocation3], 1
    %484 = vsyncpa %s483, 1
    %485 = vsyncpa [#allocation5], 1

</llo_original>
